<compile_context>
chip_gen: v5e
topology: v5e:2x2
jax: 0.10.0
libtpu: 0.0.40
codegen_flags: <defaults>
</compile_context>

<pallas_src>
import functools
import math

import jax
import jax.numpy as jnp
from jax.experimental import pallas as pl
from jax.experimental.pallas import tpu as pltpu


# ----------------------------------------------------------------------------- helpers


def _pick_tile(dim, target, align=8):
    """Largest multiple of `align` <= target that divides dim (falls back to padding)."""
    if dim <= target:
        return dim
    t = (min(target, dim) // align) * align
    while t >= align:
        if dim % t == 0:
            return t
        t -= align
    return min(target, dim)  # non-dividing tile; Pallas masks the padded last block


def _vmem_limit(est_bytes):
    """Explicit scoped-VMEM request: 2x estimate for headroom, clamped so it is safe on
    v5e/v6e (128 MiB physical) and v7x (64 MiB physical)."""
    return int(min(max(2 * est_bytes, 32 * 1024 * 1024), 48 * 1024 * 1024))


def _layernorm(z, gamma, beta, eps):
    """Row-wise LayerNorm over the last axis (f32). Shared by kernels and the reference."""
    mu = jnp.mean(z, axis=-1, keepdims=True)
    var = jnp.mean(jnp.square(z - mu), axis=-1, keepdims=True)
    return (z - mu) * jax.lax.rsqrt(var + eps) * gamma + beta


# ----------------------------------------------------------------------------- kernel 1: fused QKV projection


def _linear_kernel(x_ref, w_ref, b_ref, o_ref):
    out = jnp.dot(x_ref[...].astype(w_ref.dtype), w_ref[...],
                  preferred_element_type=jnp.float32)
    o_ref[...] = (out + b_ref[...].astype(jnp.float32)).astype(o_ref.dtype)


def _linear(x2d, w, b, *, tm):
    M, d_in = x2d.shape
    d_out = w.shape[1]
    est = (2 * tm * (d_in + d_out) * 4          # x / out tiles, double buffered
           + d_in * d_out * 2 + d_out * 4)      # resident bf16 weight + bias
    return pl.pallas_call(
        _linear_kernel,
        out_shape=jax.ShapeDtypeStruct((M, d_out), jnp.float32),
        grid_spec=pltpu.PrefetchScalarGridSpec(
            num_scalar_prefetch=0,
            grid=(pl.cdiv(M, tm),),
            in_specs=[
                pl.BlockSpec((tm, d_in), lambda i: (i, 0)),     # x tile (streamed)
                pl.BlockSpec((d_in, d_out), lambda i: (0, 0)),  # W (resident, bf16)
                pl.BlockSpec((1, d_out), lambda i: (0, 0)),     # bias
            ],
            out_specs=pl.BlockSpec((tm, d_out), lambda i: (i, 0)),
        ),
        compiler_params=pltpu.CompilerParams(
            dimension_semantics=("parallel",),
            vmem_limit_bytes=_vmem_limit(est),
        ),
    )(x2d, w, b)


# ----------------------------------------------------------------------------- kernel 2: attention core


def _attention_kernel(bias_ref, q_ref, k_ref, v_ref, o_ref, *, scale):
    qb = q_ref[0].astype(jnp.bfloat16)              # (S, Dk)
    kb = k_ref[0].astype(jnp.bfloat16)
    vb = v_ref[0].astype(jnp.bfloat16)
    # scores = q @ k^T  (contract the Dk axis of both -> MXU, f32 accumulate)
    s = jax.lax.dot_general(qb, kb, (((1,), (1,)), ((), ())),
                            preferred_element_type=jnp.float32)
    s = s * scale + bias_ref[0]                     # (S, S) + (1, S) key-padding bias
    m = jnp.max(s, axis=-1, keepdims=True)
    p = jnp.exp(s - m)
    a = p / jnp.sum(p, axis=-1, keepdims=True)
    # TODO(synk): attention-weight dropout (identity at inference)
    o_ref[0] = jnp.dot(a.astype(jnp.bfloat16), vb,
                       preferred_element_type=jnp.float32).astype(o_ref.dtype)


def _attention(q, k, v, bias, *, n_head):
    BH, S, Dk = q.shape
    scale = 1.0 / math.sqrt(Dk)
    kernel = functools.partial(_attention_kernel, scale=scale)
    est = 2 * (3 * S * Dk * 4 + S * 4) + 2 * S * Dk * 4 + S * S * 4
    return pl.pallas_call(
        kernel,
        out_shape=jax.ShapeDtypeStruct((BH, S, Dk), jnp.float32),
        grid_spec=pltpu.PrefetchScalarGridSpec(
            num_scalar_prefetch=0,
            grid=(BH,),
            in_specs=[
                pl.BlockSpec((1, 1, S), lambda i: (i // n_head, 0, 0)),  # mask bias per batch
                pl.BlockSpec((1, S, Dk), lambda i: (i, 0, 0)),
                pl.BlockSpec((1, S, Dk), lambda i: (i, 0, 0)),
                pl.BlockSpec((1, S, Dk), lambda i: (i, 0, 0)),
            ],
            out_specs=pl.BlockSpec((1, S, Dk), lambda i: (i, 0, 0)),
        ),
        compiler_params=pltpu.CompilerParams(
            dimension_semantics=("parallel",),
            vmem_limit_bytes=_vmem_limit(est),
        ),
    )(bias, q, k, v)


# ----------------------------------------------------------------------------- kernel 3: o-proj + residual + LayerNorm1


def _oproj_res_ln_kernel(a_ref, wo_ref, bo_ref, xres_ref, g_ref, bt_ref, o_ref, *, eps):
    proj = jnp.dot(a_ref[...].astype(wo_ref.dtype), wo_ref[...],
                   preferred_element_type=jnp.float32)
    # TODO(synk): dropout_1 on the attention output (identity at inference)
    z = xres_ref[...] + proj + bo_ref[...].astype(jnp.float32)
    o_ref[...] = _layernorm(z, g_ref[...], bt_ref[...], eps).astype(o_ref.dtype)


def _oproj_residual_ln(attn2d, wo, bo, xres2d, gamma, beta, *, tm, eps):
    M, D = attn2d.shape
    kernel = functools.partial(_oproj_res_ln_kernel, eps=eps)
    est = 2 * tm * D * 4 * 3 + D * D * 2 + 3 * D * 4
    return pl.pallas_call(
        kernel,
        out_shape=jax.ShapeDtypeStruct((M, D), jnp.float32),
        grid_spec=pltpu.PrefetchScalarGridSpec(
            num_scalar_prefetch=0,
            grid=(pl.cdiv(M, tm),),
            in_specs=[
                pl.BlockSpec((tm, D), lambda i: (i, 0)),   # attention output tile
                pl.BlockSpec((D, D), lambda i: (0, 0)),    # Wo (resident, bf16)
                pl.BlockSpec((1, D), lambda i: (0, 0)),    # bo
                pl.BlockSpec((tm, D), lambda i: (i, 0)),   # residual x tile
                pl.BlockSpec((1, D), lambda i: (0, 0)),    # LN gamma
                pl.BlockSpec((1, D), lambda i: (0, 0)),    # LN beta
            ],
            out_specs=pl.BlockSpec((tm, D), lambda i: (i, 0)),
        ),
        compiler_params=pltpu.CompilerParams(
            dimension_semantics=("parallel",),
            vmem_limit_bytes=_vmem_limit(est),
        ),
    )(attn2d, wo, bo, xres2d, gamma, beta)


# ----------------------------------------------------------------------------- kernel 4: FFN + residual + LayerNorm2


def _ffn_res_ln_kernel(x_ref, w1_ref, b1_ref, w2_ref, b2_ref, g_ref, bt_ref,
                       o_ref, acc_ref, xbf_ref, *, eps):
    k = pl.program_id(1)

    @pl.when(k == 0)
    def _():
        # Cast the x tile to bf16 once (reused across all d_ff slices) and fold b2
        # into the accumulator init (bias hoisting from the perf review).
        xbf_ref[...] = x_ref[...].astype(xbf_ref.dtype)
        acc_ref[...] = jnp.broadcast_to(b2_ref[...].astype(jnp.float32), acc_ref.shape)

    # One d_ff slice: h_k = relu(x @ W1[:, k] + b1[k]);  acc += h_k @ W2[k, :]
    h = jnp.dot(xbf_ref[...], w1_ref[...], preferred_element_type=jnp.float32)
    h = jnp.maximum(h + b1_ref[...].astype(jnp.float32), 0.0)
    # TODO(synk): FFN-internal dropout on h (identity at inference)
    acc_ref[...] += jnp.dot(h.astype(w2_ref.dtype), w2_ref[...],
                            preferred_element_type=jnp.float32)

    @pl.when(k == pl.num_programs(1) - 1)
    def _():
        # residual (dropout_2 == identity) + LayerNorm2, fused epilogue
        z = x_ref[...] + acc_ref[...]
        o_ref[...] = _layernorm(z, g_ref[...], bt_ref[...], eps).astype(o_ref.dtype)


def _ffn_residual_ln(x2d, w1, b1, w2, b2, gamma, beta, *, tm, block_ff, eps):
    M, D = x2d.shape
    d_ff = w1.shape[1]
    tk = _pick_tile(d_ff, 512 if block_ff is None else block_ff, align=128 if d_ff >= 128 else 8)
    grid = (pl.cdiv(M, tm), pl.cdiv(d_ff, tk))

    est = (2 * tm * D * 4                 # x tiles (double buffered)
           + 2 * (D * tk + tk * D) * 2    # bf16 W1/W2 slices (double buffered)
           + 2 * tm * D * 4               # output tiles
           + tm * D * (4 + 2)             # f32 accumulator + bf16 x copy
           + 2 * (tk + 3 * D) * 4)        # biases / gamma / beta
    cost = pl.CostEstimate(
        flops=4 * M * D * d_ff,
        transcendentals=0,
        bytes_accessed=2 * M * D * 4 + 2 * D * d_ff * 2,
    )
    kernel = functools.partial(_ffn_res_ln_kernel, eps=eps)
    return pl.pallas_call(
        kernel,
        out_shape=jax.ShapeDtypeStruct((M, D), x2d.dtype),
        grid_spec=pltpu.PrefetchScalarGridSpec(
            num_scalar_prefetch=0,
            grid=grid,
            in_specs=[
                pl.BlockSpec((tm, D), lambda i, j: (i, 0)),   # x tile (also the residual)
                pl.BlockSpec((D, tk), lambda i, j: (0, j)),   # W1 slice (bf16, streamed)
                pl.BlockSpec((1, tk), lambda i, j: (0, j)),   # b1 slice
                pl.BlockSpec((tk, D), lambda i, j: (j, 0)),   # W2 slice (bf16, streamed)
                pl.BlockSpec((1, D), lambda i, j: (0, 0)),    # b2 (folded into acc init)
                pl.BlockSpec((1, D), lambda i, j: (0, 0)),    # LN gamma
                pl.BlockSpec((1, D), lambda i, j: (0, 0)),    # LN beta
            ],
            out_specs=pl.BlockSpec((tm, D), lambda i, j: (i, 0)),
            scratch_shapes=[pltpu.VMEM((tm, D), jnp.float32),   # f32 accumulator
                            pltpu.VMEM((tm, D), jnp.bfloat16)],  # bf16 x copy
        ),
        compiler_params=pltpu.CompilerParams(
            dimension_semantics=("parallel", "arbitrary"),
            vmem_limit_bytes=_vmem_limit(est),
        ),
        cost_estimate=cost,
    )(x2d, w1, b1, w2, b2, gamma, beta)


# ----------------------------------------------------------------------------- encoder layer wrapper


def encoder_layer(x, params, mask=None, *, n_head, block_m=None, block_ff=None, eps=1e-5):
    """x: (batch, seq, d_model) f32. mask: optional (batch, seq) key-padding mask (1=keep, 0=mask)."""
    B, S, D = x.shape
    H = n_head
    Dk = D // H
    M = B * S
    x2d = x.reshape(M, D)

    tm = _pick_tile(M, 256 if block_m is None else block_m, align=8)

    # --- fused QKV projection ---
    qkv = _linear(x2d, params["wqkv"], params["bqkv"], tm=tm)            # (M, 3D) f32
    q, k, v = jnp.split(qkv, 3, axis=-1)

    def to_heads(t):  # (M, D) -> (B*H, S, Dk)
        return t.reshape(B, S, H, Dk).transpose(0, 2, 1, 3).reshape(B * H, S, Dk)

    q, k, v = to_heads(q), to_heads(k), to_heads(v)

    # key-padding mask -> additive bias over keys (masked_fill semantics, finite -1e9)
    if mask is None:
        bias = jnp.zeros((B, 1, S), jnp.float32)
    else:
        bias = (mask.reshape(B, 1, S).astype(jnp.float32) - 1.0) * 1e9

    ctx = _attention(q, k, v, bias, n_head=H)                            # (B*H, S, Dk)
    attn2d = ctx.reshape(B, H, S, Dk).transpose(0, 2, 1, 3).reshape(M, D)

    # --- o-projection + residual + LayerNorm1 (fused) ---
    x1 = _oproj_residual_ln(attn2d, params["wo"], params["bo"], x2d,
                            params["g1"], params["beta1"], tm=tm, eps=eps)

    # --- FFN + residual + LayerNorm2 (fused, d_ff tiled reduction) ---
    out2d = _ffn_residual_ln(x1, params["w1"], params["b1"], params["w2"], params["b2"],
                             params["g2"], params["beta2"],
                             tm=tm, block_ff=block_ff, eps=eps)
    return out2d.reshape(B, S, D)


# ----------------------------------------------------------------------------- params & pure-JAX reference


def init_params(key, d_model, d_ff, n_head, *, weight_dtype=jnp.bfloat16):
    """nn.Linear-style U(-1/sqrt(fan_in), 1/sqrt(fan_in)); weights stored (in, out), cast bf16."""
    del n_head
    ks = jax.random.split(key, 12)

    def linear_init(kw, kb, fan_in, fan_out):
        bound = 1.0 / math.sqrt(fan_in)
        w = jax.random.uniform(kw, (fan_in, fan_out), jnp.float32, -bound, bound)
        b = jax.random.uniform(kb, (1, fan_out), jnp.float32, -bound, bound)
        return w.astype(weight_dtype), b

    wq, bq = linear_init(ks[0], ks[1], d_model, d_model)
    wk, bk = linear_init(ks[2], ks[3], d_model, d_model)
    wv, bv = linear_init(ks[4], ks[5], d_model, d_model)
    wo, bo = linear_init(ks[6], ks[7], d_model, d_model)
    w1, b1 = linear_init(ks[8], ks[9], d_model, d_ff)
    w2, b2 = linear_init(ks[10], ks[11], d_ff, d_model)

    return dict(
        wqkv=jnp.concatenate([wq, wk, wv], axis=1),
        bqkv=jnp.concatenate([bq, bk, bv], axis=1),
        wo=wo, bo=bo, w1=w1, b1=b1, w2=w2, b2=b2,
        g1=jnp.ones((1, d_model), jnp.float32), beta1=jnp.zeros((1, d_model), jnp.float32),
        g2=jnp.ones((1, d_model), jnp.float32), beta2=jnp.zeros((1, d_model), jnp.float32),
    )


def encoder_layer_ref(x, params, mask, *, n_head, eps=1e-5):
    """Pure-JAX reference mirroring the kernels' bf16-matmul / f32-accumulate math."""
    B, S, D = x.shape
    H, Dk = n_head, D // n_head
    x2d = x.reshape(-1, D)

    def lin(a, w, b):
        return jnp.dot(a.astype(w.dtype), w,
                       preferred_element_type=jnp.float32) + b.astype(jnp.float32)

    qkv = lin(x2d, params["wqkv"], params["bqkv"])
    q, k, v = jnp.split(qkv, 3, axis=-1)

    def heads(t):
        return t.reshape(B, S, H, Dk).transpose(0, 2, 1, 3)

    q, k, v = heads(q), heads(k), heads(v)                         # (B, H, S, Dk)
    if mask is None:
        bias = jnp.zeros((B, 1, 1, S), jnp.float32)
    else:
        bias = (mask.reshape(B, 1, 1, S).astype(jnp.float32) - 1.0) * 1e9
    scale = 1.0 / math.sqrt(Dk)
    s = jnp.einsum("bhqd,bhkd->bhqk", q.astype(jnp.bfloat16), k.astype(jnp.bfloat16),
                   preferred_element_type=jnp.float32) * scale + bias
    m = jnp.max(s, axis=-1, keepdims=True)
    p = jnp.exp(s - m)
    a = p / jnp.sum(p, axis=-1, keepdims=True)
    ctx = jnp.einsum("bhqk,bhkd->bhqd", a.astype(jnp.bfloat16), v.astype(jnp.bfloat16),
                     preferred_element_type=jnp.float32)
    attn2d = ctx.transpose(0, 2, 1, 3).reshape(-1, D)

    x1 = _layernorm(x2d + lin(attn2d, params["wo"], params["bo"]),
                    params["g1"], params["beta1"], eps)
    h = jnp.maximum(lin(x1, params["w1"], params["b1"]), 0.0)
    ff = lin(h, params["w2"], params["b2"])
    out = _layernorm(x1 + ff, params["g2"], params["beta2"], eps)
    return out.reshape(B, S, D)


# ----------------------------------------------------------------------------- main


if __name__ == "__main__":
    key = jax.random.PRNGKey(0)
    batch, seq, d_model, n_head, d_ff = 2, 128, 128, 4, 512   # lane-dense dims (multiples of 128)

    kx, kp = jax.random.split(key)
    x = jax.random.normal(kx, (batch, seq, d_model), dtype=jnp.float32)
    params = init_params(kp, d_model, d_ff, n_head)

    # key-padding mask: second batch element has its last 16 key positions masked out
    mask = jnp.ones((batch, seq), jnp.float32).at[1, seq - 16:].set(0.0)

    # block_m=128 / block_ff=256 give multi-step grids even at these small test shapes
    out = encoder_layer(x, params, mask, n_head=n_head, block_m=128, block_ff=256)
    out = jax.block_until_ready(out)

    ref = encoder_layer_ref(x, params, mask, n_head=n_head)
    assert out.shape == x.shape
    max_err = float(jnp.max(jnp.abs(out - ref)))
    assert jnp.allclose(out, ref, atol=2e-2, rtol=2e-2), f"max abs err {max_err}"

    print("KERNEL_OK")
</pallas_src>

<mosaic_0001>
module attributes {stable_mosaic.version = 11 : i64} {
  func.func @_linear_kernel(%arg0: i32, %arg1: memref<128x128xf32, #tpu.memory_space<vmem>>, %arg2: memref<128x384xbf16, #tpu.memory_space<vmem>>, %arg3: memref<1x384xf32, #tpu.memory_space<vmem>>, %arg4: memref<128x384xf32, #tpu.memory_space<vmem>>) attributes {dimension_semantics = [#tpu.dimension_semantics<parallel>], iteration_bounds = array<i64: 2>, scalar_prefetch = 0 : i64, scratch_operands = 0 : i64, tpu.core_type = #tpu.core_type<tc>, window_params = [{transform_indices = @transform_0, window_bounds = array<i64: 128, 128>}, {pipeline_mode = #tpu.pipeline_mode<synchronous>, transform_indices = @transform_1, window_bounds = array<i64: 128, 384>}, {pipeline_mode = #tpu.pipeline_mode<synchronous>, transform_indices = @transform_2, window_bounds = array<i64: 1, 384>}, {transform_indices = @transform_3, window_bounds = array<i64: 128, 384>}]} {
    %c0 = arith.constant 0 : index
    %c0_0 = arith.constant 0 : index
    %0 = vector.load %arg1[%c0, %c0_0] : memref<128x128xf32, #tpu.memory_space<vmem>>, vector<128x128xf32>
    %1 = arith.truncf %0 : vector<128x128xf32> to vector<128x128xbf16>
    %c0_1 = arith.constant 0 : index
    %c0_2 = arith.constant 0 : index
    %2 = vector.load %arg2[%c0_1, %c0_2] : memref<128x384xbf16, #tpu.memory_space<vmem>>, vector<128x384xbf16>
    %cst = arith.constant dense<0.000000e+00> : vector<128x384xf32>
    %3 = tpu.matmul %1, %2, %cst {dimension_numbers = #tpu.dot_dimension_numbers<[1], [0], [0], [1], [0, 0, 1, 1], [], []>} : vector<128x128xbf16>, vector<128x384xbf16>, vector<128x384xf32> -> vector<128x384xf32>
    %c0_3 = arith.constant 0 : index
    %c0_4 = arith.constant 0 : index
    %4 = vector.load %arg3[%c0_3, %c0_4] : memref<1x384xf32, #tpu.memory_space<vmem>>, vector<1x384xf32>
    %5 = vector.broadcast %4 : vector<1x384xf32> to vector<128x384xf32>
    %6 = arith.addf %3, %5 : vector<128x384xf32>
    %c0_5 = arith.constant 0 : index
    %c0_6 = arith.constant 0 : index
    %7 = vector.load %arg4[%c0_5, %c0_6] : memref<128x384xf32, #tpu.memory_space<vmem>>, vector<128x384xf32>
    tpu.vector_store %arg4[%c0_5, %c0_6], %6 {strides = array<i32>} : memref<128x384xf32, #tpu.memory_space<vmem>>, vector<128x384xf32>,
    return
  }
  func.func @transform_0(%arg0: i32) -> (i32, i32) {
    %c0_i32 = arith.constant 0 : i32
    %c0_i32_0 = arith.constant 0 : i32
    return %arg0, %c0_i32 : i32, i32
  }
  func.func @transform_1(%arg0: i32) -> (i32, i32) {
    %c0_i32 = arith.constant 0 : i32
    %c0_i32_0 = arith.constant 0 : i32
    %c0_i32_1 = arith.constant 0 : i32
    return %c0_i32, %c0_i32_0 : i32, i32
  }
  func.func @transform_2(%arg0: i32) -> (i32, i32) {
    %c0_i32 = arith.constant 0 : i32
    %c0_i32_0 = arith.constant 0 : i32
    %c0_i32_1 = arith.constant 0 : i32
    return %c0_i32, %c0_i32_0 : i32, i32
  }
  func.func @transform_3(%arg0: i32) -> (i32, i32) {
    %c0_i32 = arith.constant 0 : i32
    %c0_i32_0 = arith.constant 0 : i32
    return %arg0, %c0_i32 : i32, i32
  }
}

</mosaic_0001>

<llo_original>
// kernel: tpu_custom_call.1
$region0: #{tpu_custom_call.1}
  #allocation0 [shape = 'u32[]', space=smem, size = 0x4, offset = 0x4, fixed_abs, tag = 'smem constant byte address 0x4 - core index']
  #allocation1 [shape = 'u32[72,128]{1,0:T(1,128)}', space=vmem, size = 0x9000, scoped, tag = 'internal scratch']
  %s0 = inlined_call_operand.hbm [shape: f32[256,128], index: 0, kind: input, shape index: {}]
  %s1 = inlined_call_operand.hbm [shape: bf16[128,384], index: 1, kind: input, shape index: {}]
  %s2 = inlined_call_operand.hbm [shape: f32[1,384], index: 2, kind: input, shape index: {}]
  %s3 = inlined_call_operand.hbm [shape: f32[256,384], index: 3, kind: output, shape index: {}]
  %s4 = sld [smem:[#allocation0]]
  $region57: #{tpu_custom_call.1} parent=0
    _
  %s6 = ssub.s32 1, %s4
  %s7 = scalar_select 0, %s6, %s4
  $region1: #{tpu_custom_call.1} parent=0
    #allocation2 [shape = 'u8[131072]{0}', space=vmem, size = 0x20000, scoped, tag = 'input window, operand 0']
    #allocation3 [shape = 's32[2]{0}', space=sflag, size = 0x8, scoped, tag = 'scoped memory for tpu_custom_call.1']
    #allocation4 [shape = 's32[2]{0}', space=sflag, size = 0x8, scoped, tag = 'scoped memory for tpu_custom_call.1']
    #allocation5 [shape = 'u8[98304]{0}', space=vmem, size = 0x18000, scoped, tag = 'input window, operand 1, single buffered']
    #allocation6 [shape = 's32[1]{0}', space=sflag, size = 0x4, scoped, tag = 'scoped memory for tpu_custom_call.1']
    #allocation7 [shape = 'u8[1536]{0}', space=vmem, size = 0x800, scoped, tag = 'input window, operand 2, single buffered']
    #allocation8 [shape = 'u8[393216]{0}', space=vmem, size = 0x60000, scoped, tag = 'output window, operand 0']
    %8 = vsyncpa [#allocation3], 0
    %s9 = scalar_lea.sflag [#allocation3], 1
    %10 = vsyncpa %s9, 0
    %11 = vsyncpa [#allocation6], 0
    %12 = vsyncpa [#allocation4], 0
    %s13 = scalar_lea.sflag [#allocation4], 1
    %14 = vsyncpa %s13, 0
    loop: start=0, step=1, limit=4
    $region2: #{tpu_custom_call.1} parent=1 // loop_pre_header
      _
    $region3: #{tpu_custom_call.1} parent=1 // loop_header
      %s16 = sphi 0, %s20
      %p17 = scmp.ge.s32.totalorder %s16, 4
      %s26 = sphi 0, %s28
      %s29 = sphi 0, %s26
      %s30 = sphi 0, %s29
      %s46 = sphi 0, %s30
      %s50 = sphi 0, %s50
      %s52 = sphi 0, %s50
      %s53 = sphi 0, %s52
      %s67 = sphi 0, %s53
      %s71 = sphi 0, %s71
      %s73 = sphi 0, %s71
      %s74 = sphi 0, %s73
      %s88 = sphi 0, %s74
      %s94 = sphi 0, %s96
      %s97 = sphi 0, %s94
      %s98 = sphi 0, %s97
      %s114 = sphi 0, %s98
    $region4: #{tpu_custom_call.1} parent=1 // loop_header_branch
      %19 = sbr.rel (%p17) target = $region8
    $region5: #{tpu_custom_call.1} parent=1 // loop_body
      %s21 = ssub.s32 %s16, 1
      %s22 = ssub.s32 %s16, 2
      %s23 = sadd.s32 %s16, 1
      %s24 = ssub.s32 %s16, %s23
      %p25 = scmp.eq.s32.totalorder %s24, 0
      %s27 = sadd.s32 %s26, 1
      %s28 = scalar_select %p25, %s26, %s27
      %p31 = pneg %p25
      %p32 = scmp.eq.s32.totalorder %s16, 1
      %p33 = por %p31, %p32
      %p34 = scmp.ne.s32.totalorder %s26, %s29
      %p35 = scmp.eq.s32.totalorder %s16, 0
      %p36 = por %p34, %p35
      %p37 = scmp.ne.s32.totalorder %s26, %s29
      %p38 = scmp.eq.s32.totalorder %s21, 1
      %p39 = por %p37, %p38
      %p40 = scmp.ne.s32.totalorder %s29, %s30
      %p41 = scmp.eq.s32.totalorder %s21, 0
      %p42 = por %p40, %p41
      %p43 = scmp.ne.s32.totalorder %s29, %s30
      %p44 = scmp.eq.s32.totalorder %s22, 1
      %p45 = por %p43, %p44
      %p47 = scmp.ne.s32.totalorder %s30, %s46
      %p48 = scmp.eq.s32.totalorder %s22, 0
      %p49 = por %p47, %p48
      %s51 = sadd.s32 %s50, 1
      %p54 = scmp.eq.s32.totalorder %s16, 1
      %p55 = scmp.ne.s32.totalorder %s50, %s52
      %p56 = scmp.eq.s32.totalorder %s16, 0
      %p57 = por %p55, %p56
      %p58 = scmp.ne.s32.totalorder %s50, %s52
      %p59 = scmp.eq.s32.totalorder %s21, 1
      %p60 = por %p58, %p59
      %p61 = scmp.ne.s32.totalorder %s52, %s53
      %p62 = scmp.eq.s32.totalorder %s21, 0
      %p63 = por %p61, %p62
      %p64 = scmp.ne.s32.totalorder %s52, %s53
      %p65 = scmp.eq.s32.totalorder %s22, 1
      %p66 = por %p64, %p65
      %p68 = scmp.ne.s32.totalorder %s53, %s67
      %p69 = scmp.eq.s32.totalorder %s22, 0
      %p70 = por %p68, %p69
      %s72 = sadd.s32 %s71, 1
      %p75 = scmp.eq.s32.totalorder %s16, 1
      %p76 = scmp.ne.s32.totalorder %s71, %s73
      %p77 = scmp.eq.s32.totalorder %s16, 0
      %p78 = por %p76, %p77
      %p79 = scmp.ne.s32.totalorder %s71, %s73
      %p80 = scmp.eq.s32.totalorder %s21, 1
      %p81 = por %p79, %p80
      %p82 = scmp.ne.s32.totalorder %s73, %s74
      %p83 = scmp.eq.s32.totalorder %s21, 0
      %p84 = por %p82, %p83
      %p85 = scmp.ne.s32.totalorder %s73, %s74
      %p86 = scmp.eq.s32.totalorder %s22, 1
      %p87 = por %p85, %p86
      %p89 = scmp.ne.s32.totalorder %s74, %s88
      %p90 = scmp.eq.s32.totalorder %s22, 0
      %p91 = por %p89, %p90
      %s92 = ssub.s32 %s16, %s23
      %p93 = scmp.eq.s32.totalorder %s92, 0
      %s95 = sadd.s32 %s94, 1
      %s96 = scalar_select %p93, %s94, %s95
      %p99 = pneg %p93
      %p100 = scmp.eq.s32.totalorder %s16, 1
      %p101 = por %p99, %p100
      %p102 = scmp.ne.s32.totalorder %s94, %s97
      %p103 = scmp.eq.s32.totalorder %s16, 0
      %p104 = por %p102, %p103
      %p105 = scmp.ne.s32.totalorder %s94, %s97
      %p106 = scmp.eq.s32.totalorder %s21, 1
      %p107 = por %p105, %p106
      %p108 = scmp.ne.s32.totalorder %s97, %s98
      %p109 = scmp.eq.s32.totalorder %s21, 0
      %p110 = por %p108, %p109
      %p111 = scmp.ne.s32.totalorder %s97, %s98
      %p112 = scmp.eq.s32.totalorder %s22, 1
      %p113 = por %p111, %p112
      %p115 = scmp.ne.s32.totalorder %s98, %s114
      %p116 = scmp.eq.s32.totalorder %s22, 0
      %p117 = por %p115, %p116
      %p118 = scmp.le.s32.totalorder 1, %s16
      %p119 = scmp.lt.s32.totalorder %s16, 3
      %p120 = pnand %p118, %p119
      %p121 = pneg %p120
      // Predicated region
      $region9: #{tpu_custom_call.1} parent=5 // pred_check
        _
      $region10: #{tpu_custom_call.1} parent=5 // pred_check_branch
        %123 = sbr.rel (%p120) target = $region12
      $region11: #{tpu_custom_call.1} parent=5 // pred_region
        %s124 = ssub.s32 %s16, 1
        // Predicated region
        $region13: #{tpu_custom_call.1} parent=11 // pred_check
          %p125 = pneg %p63
        $region14: #{tpu_custom_call.1} parent=11 // pred_check_branch
          %127 = sbr.rel (%p125) target = $region16
        $region15: #{tpu_custom_call.1} parent=11 // pred_region
          %129 = vsyncadd [#allocation6], 0
          %s130 = sshll.u32 %s1, 4
          %s131 = int_to_ptr.hbm [resolvable:$true] %s130
          %s132 = sshll.u32 [#allocation5], 4
          %s133 = int_to_ptr.vmem [resolvable:$true] %s132
          %138 = dma.hbm_to_vmem [thread:$0]  %s131, 3072, %s133, [#allocation6], 192, 192, 12
        $region16: #{tpu_custom_call.1} parent=11 // pred_fallthru
          _
        // Predicated region
        $region17: #{tpu_custom_call.1} parent=11 // pred_check
          %p139 = pneg %p84
        $region18: #{tpu_custom_call.1} parent=11 // pred_check_branch
          %141 = sbr.rel (%p139) target = $region20
        $region19: #{tpu_custom_call.1} parent=11 // pred_region
          %143 = vsyncadd [#allocation6], 0
          %s145 = sshll.u32 %s2, 4
          %s146 = int_to_ptr.hbm [resolvable:$true] %s145
          %s147 = sshll.u32 [#allocation7], 4
          %s148 = int_to_ptr.vmem [resolvable:$true] %s147
          %150 = dma.hbm_to_vmem [thread:$0]  %s146, 48, %s148, [#allocation6]
        $region20: #{tpu_custom_call.1} parent=11 // pred_fallthru
          _
      $region12: #{tpu_custom_call.1} parent=5 // pred_fallthru
        _
      %p151 = scmp.lt.s32.totalorder %s16, 2
      // Predicated region
      $region21: #{tpu_custom_call.1} parent=5 // pred_check
        %p152 = pneg %p151
      $region22: #{tpu_custom_call.1} parent=5 // pred_check_branch
        %154 = sbr.rel (%p152) target = $region24
      $region23: #{tpu_custom_call.1} parent=5 // pred_region
        // Predicated region
        $region25: #{tpu_custom_call.1} parent=23 // pred_check
          %p155 = pneg %p36
        $region26: #{tpu_custom_call.1} parent=23 // pred_check_branch
          %157 = sbr.rel (%p155) target = $region28
        $region27: #{tpu_custom_call.1} parent=23 // pred_region
          %s158 = sand.u32 %s26, 1
          %s159 = scalar_lea.sflag [#allocation3], %s158
          %s160 = sand.u32 %s26, 1
          %s161 = smul.addr %s160, 128
          %s162 = scalar_lea.vmem [#allocation2], %s161
          %s163 = smul.u32 16, %s16
          %165 = vsyncadd %s159, 0
          %s166 = smul.addr %s163, 8
          %s167 = scalar_lea.hbm %s0, %s166
          %s168 = sshll.u32 %s167, 4
          %s169 = int_to_ptr.hbm [resolvable:$true] %s168
          %s170 = sshll.u32 %s162, 4
          %s171 = int_to_ptr.vmem [resolvable:$true] %s170
          %176 = dma.hbm_to_vmem [thread:$0]  %s169, 2048, %s171, %s159, 128, 128, 8
        $region28: #{tpu_custom_call.1} parent=23 // pred_fallthru
          _
      $region24: #{tpu_custom_call.1} parent=5 // pred_fallthru
        _
      %p177 = scmp.le.s32.totalorder 1, %s16
      %p178 = scmp.lt.s32.totalorder %s16, 3
      %p179 = pnand %p177, %p178
      %p180 = pneg %p179
      // Predicated region
      $region29: #{tpu_custom_call.1} parent=5 // pred_check
        _
      $region30: #{tpu_custom_call.1} parent=5 // pred_check_branch
        %182 = sbr.rel (%p179) target = $region32
      $region31: #{tpu_custom_call.1} parent=5 // pred_region
        %s183 = ssub.s32 %s16, 1
        %s184 = sand.u32 %s29, 1
        %s185 = scalar_lea.sflag [#allocation3], %s184
        %s186 = sand.u32 %s29, 1
        %s187 = smul.addr %s186, 128
        %s188 = scalar_lea.vmem [#allocation2], %s187
        // Predicated region
        $region33: #{tpu_custom_call.1} parent=31 // pred_check
          %p189 = pneg %p42
        $region34: #{tpu_custom_call.1} parent=31 // pred_check_branch
          %191 = sbr.rel (%p189) target = $region36
        $region35: #{tpu_custom_call.1} parent=31 // pred_region
          %193 = dma.done %s185, 2048
        $region36: #{tpu_custom_call.1} parent=31 // pred_fallthru
          _
        // Predicated region
        $region37: #{tpu_custom_call.1} parent=31 // pred_check
          %p194 = pneg %p63
        $region38: #{tpu_custom_call.1} parent=31 // pred_check_branch
          %196 = sbr.rel (%p194) target = $region40
        $region39: #{tpu_custom_call.1} parent=31 // pred_region
          %198 = dma.done [#allocation6], 3072
        $region40: #{tpu_custom_call.1} parent=31 // pred_fallthru
          _
        // Predicated region
        $region41: #{tpu_custom_call.1} parent=31 // pred_check
          %p199 = pneg %p84
        $region42: #{tpu_custom_call.1} parent=31 // pred_check_branch
          %201 = sbr.rel (%p199) target = $region44
        $region43: #{tpu_custom_call.1} parent=31 // pred_region
          %203 = dma.done [#allocation6], 48
        $region44: #{tpu_custom_call.1} parent=31 // pred_fallthru
          _
        %s204 = sand.u32 %s29, 1
        %s205 = scalar_lea.sflag [#allocation3], %s204
        %s206 = sand.u32 %s29, 1
        %s207 = smul.addr %s206, 128
        %s208 = scalar_lea.vmem [#allocation2], %s207
        %p209 = pneg %p42
        %p210 = pneg %p39
        %p211 = pneg %p63
        %p212 = pneg %p60
        %p213 = pneg %p84
        %p214 = pneg %p81
        %p215 = pneg %p110
        %p216 = pneg %p107
        %s217 = sand.u32 %s97, 1
        %s218 = scalar_lea.sflag [#allocation4], %s217
        %s219 = sand.u32 %s97, 1
        %s220 = smul.addr %s219, 384
        %s221 = scalar_lea.vmem [#allocation8], %s220
        %s222 = smul.u32 16, %s21
        %s223 = smul.u32 16, %s21
        %v224 = vld [vmem:[%s188] sm:$0xff]
        %v225 = vld [vmem:[%s188 + $0x8] sm:$0xff]
        %v226 = vld [vmem:[%s188 + $0x10] sm:$0xff]
        %v227 = vld [vmem:[%s188 + $0x18] sm:$0xff]
        %v228 = vld [vmem:[%s188 + $0x20] sm:$0xff]
        %v229 = vld [vmem:[%s188 + $0x28] sm:$0xff]
        %v230 = vld [vmem:[%s188 + $0x30] sm:$0xff]
        %v231 = vld [vmem:[%s188 + $0x38] sm:$0xff]
        %v232 = vld [vmem:[%s188 + $0x40] sm:$0xff]
        %v233 = vld [vmem:[%s188 + $0x48] sm:$0xff]
        %v234 = vld [vmem:[%s188 + $0x50] sm:$0xff]
        %v235 = vld [vmem:[%s188 + $0x58] sm:$0xff]
        %v236 = vld [vmem:[%s188 + $0x60] sm:$0xff]
        %v237 = vld [vmem:[%s188 + $0x68] sm:$0xff]
        %v238 = vld [vmem:[%s188 + $0x70] sm:$0xff]
        %v239 = vld [vmem:[%s188 + $0x78] sm:$0xff]
        %v240 = vpack.c.bf16 %v225, %v224
        %v241 = vpack.c.bf16 %v227, %v226
        %v242 = vpack.c.bf16 %v229, %v228
        %v243 = vpack.c.bf16 %v231, %v230
        %v244 = vpack.c.bf16 %v233, %v232
        %v245 = vpack.c.bf16 %v235, %v234
        %v246 = vpack.c.bf16 %v237, %v236
        %v247 = vpack.c.bf16 %v239, %v238
        %v248 = vld [vmem:[#allocation5] sm:$0xff]
        %v249 = vld [vmem:[#allocation5 + $0x8] sm:$0xf]
        %v250 = vld [vmem:[#allocation5 + $0xc] sm:$0xff]
        %v251 = vld [vmem:[#allocation5 + $0x14] sm:$0xf]
        %v252 = vld [vmem:[#allocation5 + $0x18] sm:$0xff]
        %v253 = vld [vmem:[#allocation5 + $0x20] sm:$0xf]
        %v254 = vld [vmem:[#allocation5 + $0x24] sm:$0xff]
        %v255 = vld [vmem:[#allocation5 + $0x2c] sm:$0xf]
        %v256 = vld [vmem:[#allocation5 + $0x30] sm:$0xff]
        %v257 = vld [vmem:[#allocation5 + $0x38] sm:$0xf]
        %v258 = vld [vmem:[#allocation5 + $0x3c] sm:$0xff]
        %v259 = vld [vmem:[#allocation5 + $0x44] sm:$0xf]
        %v260 = vld [vmem:[#allocation5 + $0x48] sm:$0xff]
        %v261 = vld [vmem:[#allocation5 + $0x50] sm:$0xf]
        %v262 = vld [vmem:[#allocation5 + $0x54] sm:$0xff]
        %v263 = vld [vmem:[#allocation5 + $0x5c] sm:$0xf]
        %v264 = vld [vmem:[#allocation5 + $0x60] sm:$0xff]
        %v265 = vld [vmem:[#allocation5 + $0x68] sm:$0xf]
        %v266 = vld [vmem:[#allocation5 + $0x6c] sm:$0xff]
        %v267 = vld [vmem:[#allocation5 + $0x74] sm:$0xf]
        %v268 = vld [vmem:[#allocation5 + $0x78] sm:$0xff]
        %v269 = vld [vmem:[#allocation5 + $0x80] sm:$0xf]
        %v270 = vld [vmem:[#allocation5 + $0x84] sm:$0xff]
        %v271 = vld [vmem:[#allocation5 + $0x8c] sm:$0xf]
        %v272 = vld [vmem:[#allocation5 + $0x90] sm:$0xff]
        %v273 = vld [vmem:[#allocation5 + $0x98] sm:$0xf]
        %v274 = vld [vmem:[#allocation5 + $0x9c] sm:$0xff]
        %v275 = vld [vmem:[#allocation5 + $0xa4] sm:$0xf]
        %v276 = vld [vmem:[#allocation5 + $0xa8] sm:$0xff]
        %v277 = vld [vmem:[#allocation5 + $0xb0] sm:$0xf]
        %v278 = vld [vmem:[#allocation5 + $0xb4] sm:$0xff]
        %v279 = vld [vmem:[#allocation5 + $0xbc] sm:$0xf]
        %v280 = vld [vmem:[#allocation7] sm:$0x7]
        %v282 = vperm.slane %v280, 0
        %v283 = vperm.slane %v280, 1
        %v284 = vperm.slane %v280, 2
        %v320 = vunpack.c.l.b16 %v248
        %v321 = vunpack.c.h.b16 %v248
        %v322 = vunpack.c.l.b16 %v249
        %v323 = vunpack.c.l.b16 %v250
        %v324 = vunpack.c.h.b16 %v250
        %v325 = vunpack.c.l.b16 %v251
        %v326 = vunpack.c.l.b16 %v252
        %v327 = vunpack.c.h.b16 %v252
        %v328 = vunpack.c.l.b16 %v253
        %v329 = vunpack.c.l.b16 %v254
        %v330 = vunpack.c.h.b16 %v254
        %v331 = vunpack.c.l.b16 %v255
        %v332 = vunpack.c.l.b16 %v256
        %v333 = vunpack.c.h.b16 %v256
        %v334 = vunpack.c.l.b16 %v257
        %v335 = vunpack.c.l.b16 %v258
        %v336 = vunpack.c.h.b16 %v258
        %v337 = vunpack.c.l.b16 %v259
        %v338 = vunpack.c.l.b16 %v260
        %v339 = vunpack.c.h.b16 %v260
        %v340 = vunpack.c.l.b16 %v261
        %v341 = vunpack.c.l.b16 %v262
        %v342 = vunpack.c.h.b16 %v262
        %v343 = vunpack.c.l.b16 %v263
        %v344 = vunpack.c.l.b16 %v264
        %v345 = vunpack.c.h.b16 %v264
        %v346 = vunpack.c.l.b16 %v265
        %v347 = vunpack.c.l.b16 %v266
        %v348 = vunpack.c.h.b16 %v266
        %v349 = vunpack.c.l.b16 %v267
        %v350 = vunpack.c.l.b16 %v268
        %v351 = vunpack.c.h.b16 %v268
        %v352 = vunpack.c.l.b16 %v269
        %v353 = vunpack.c.l.b16 %v270
        %v354 = vunpack.c.h.b16 %v270
        %v355 = vunpack.c.l.b16 %v271
        %v356 = vunpack.c.l.b16 %v272
        %v357 = vunpack.c.h.b16 %v272
        %v358 = vunpack.c.l.b16 %v273
        %v359 = vunpack.c.l.b16 %v274
        %v360 = vunpack.c.h.b16 %v274
        %v361 = vunpack.c.l.b16 %v275
        %v362 = vunpack.c.l.b16 %v276
        %v363 = vunpack.c.h.b16 %v276
        %v364 = vunpack.c.l.b16 %v277
        %v365 = vunpack.c.l.b16 %v278
        %v366 = vunpack.c.h.b16 %v278
        %v367 = vunpack.c.l.b16 %v279
        %v368 = vpack.c.b16 %v323, %v320
        %v369 = vpack.c.b16 %v324, %v321
        %v370 = vpack.c.b16 %v325, %v322
        %v371 = vpack.c.b16 %v329, %v326
        %v372 = vpack.c.b16 %v330, %v327
        %v373 = vpack.c.b16 %v331, %v328
        %v374 = vpack.c.b16 %v335, %v332
        %v375 = vpack.c.b16 %v336, %v333
        %v376 = vpack.c.b16 %v337, %v334
        %v377 = vpack.c.b16 %v341, %v338
        %v378 = vpack.c.b16 %v342, %v339
        %v379 = vpack.c.b16 %v343, %v340
        %v380 = vpack.c.b16 %v347, %v344
        %v381 = vpack.c.b16 %v348, %v345
        %v382 = vpack.c.b16 %v349, %v346
        %v383 = vpack.c.b16 %v353, %v350
        %v384 = vpack.c.b16 %v354, %v351
        %v385 = vpack.c.b16 %v355, %v352
        %v386 = vpack.c.b16 %v359, %v356
        %v387 = vpack.c.b16 %v360, %v357
        %v388 = vpack.c.b16 %v361, %v358
        %v389 = vpack.c.b16 %v365, %v362
        %v390 = vpack.c.b16 %v366, %v363
        %v391 = vpack.c.b16 %v367, %v364
        %416 = vmatpush.bf16.msra.mxu0 %v389
        %417 = vmatpush.bf16.msra.mxu0 %v386
        %418 = vmatpush.bf16.msra.mxu0 %v383
        %419 = vmatpush.bf16.msra.mxu0 %v380
        %420 = vmatpush.bf16.msra.mxu0 %v377
        %421 = vmatpush.bf16.msra.mxu0 %v374
        %422 = vmatpush.bf16.msra.mxu0 %v371
        %423 = vmatpush.bf16.msra.mxu0 %v368
        %424 = vmatmul.bf16.gmra.mxu0 %v240
        %v425 = vpop.f32.mrf.mxu0
        %v426 = vadd.f32 %v282, %v425
        %v427 = vpop.f32.mrf.mxu0
        %v428 = vadd.f32 %v282, %v427
        %429 = vmatmul.bf16.gmra.mxu0 %v241
        %v430 = vpop.f32.mrf.mxu0
        %v431 = vadd.f32 %v282, %v430
        %v432 = vpop.f32.mrf.mxu0
        %v433 = vadd.f32 %v282, %v432
        %434 = vmatmul.bf16.gmra.mxu0 %v242
        %v435 = vpop.f32.mrf.mxu0
        %v436 = vadd.f32 %v282, %v435
        %v437 = vpop.f32.mrf.mxu0
        %v438 = vadd.f32 %v282, %v437
        %439 = vmatmul.bf16.gmra.mxu0 %v243
        %v440 = vpop.f32.mrf.mxu0
        %v441 = vadd.f32 %v282, %v440
        %v442 = vpop.f32.mrf.mxu0
        %v443 = vadd.f32 %v282, %v442
        %444 = vmatmul.bf16.gmra.mxu0 %v244
        %v445 = vpop.f32.mrf.mxu0
        %v446 = vadd.f32 %v282, %v445
        %v447 = vpop.f32.mrf.mxu0
        %v448 = vadd.f32 %v282, %v447
        %449 = vmatmul.bf16.gmra.mxu0 %v245
        %v450 = vpop.f32.mrf.mxu0
        %v451 = vadd.f32 %v282, %v450
        %v452 = vpop.f32.mrf.mxu0
        %v453 = vadd.f32 %v282, %v452
        %454 = vmatmul.bf16.gmra.mxu0 %v246
        %v455 = vpop.f32.mrf.mxu0
        %v456 = vadd.f32 %v282, %v455
        %v457 = vpop.f32.mrf.mxu0
        %v458 = vadd.f32 %v282, %v457
        %459 = vmatmul.bf16.gmra.mxu0 %v247
        %v460 = vpop.f32.mrf.mxu0
        %v461 = vadd.f32 %v282, %v460
        %v462 = vpop.f32.mrf.mxu0
        %v463 = vadd.f32 %v282, %v462
        %464 = vdwg.mxu0
        %465 = vmatpush.bf16.msra.mxu0 %v390
        %466 = vmatpush.bf16.msra.mxu0 %v387
        %467 = vmatpush.bf16.msra.mxu0 %v384
        %468 = vmatpush.bf16.msra.mxu0 %v381
        %469 = vmatpush.bf16.msra.mxu0 %v378
        %470 = vmatpush.bf16.msra.mxu0 %v375
        %471 = vmatpush.bf16.msra.mxu0 %v372
        %472 = vmatpush.bf16.msra.mxu0 %v369
        %473 = vmatmul.bf16.gmra.mxu0 %v240
        %v474 = vpop.f32.mrf.mxu0
        %v475 = vadd.f32 %v283, %v474
        %v476 = vpop.f32.mrf.mxu0
        %v477 = vadd.f32 %v283, %v476
        %478 = vmatmul.bf16.gmra.mxu0 %v241
        %v479 = vpop.f32.mrf.mxu0
        %v480 = vadd.f32 %v283, %v479
        %v481 = vpop.f32.mrf.mxu0
        %v482 = vadd.f32 %v283, %v481
        %483 = vmatmul.bf16.gmra.mxu0 %v242
        %v484 = vpop.f32.mrf.mxu0
        %v485 = vadd.f32 %v283, %v484
        %v486 = vpop.f32.mrf.mxu0
        %v487 = vadd.f32 %v283, %v486
        %488 = vmatmul.bf16.gmra.mxu0 %v243
        %v489 = vpop.f32.mrf.mxu0
        %v490 = vadd.f32 %v283, %v489
        %v491 = vpop.f32.mrf.mxu0
        %v492 = vadd.f32 %v283, %v491
        %493 = vmatmul.bf16.gmra.mxu0 %v244
        %v494 = vpop.f32.mrf.mxu0
        %v495 = vadd.f32 %v283, %v494
        %v496 = vpop.f32.mrf.mxu0
        %v497 = vadd.f32 %v283, %v496
        %498 = vmatmul.bf16.gmra.mxu0 %v245
        %v499 = vpop.f32.mrf.mxu0
        %v500 = vadd.f32 %v283, %v499
        %v501 = vpop.f32.mrf.mxu0
        %v502 = vadd.f32 %v283, %v501
        %503 = vmatmul.bf16.gmra.mxu0 %v246
        %v504 = vpop.f32.mrf.mxu0
        %v505 = vadd.f32 %v283, %v504
        %v506 = vpop.f32.mrf.mxu0
        %v507 = vadd.f32 %v283, %v506
        %508 = vmatmul.bf16.gmra.mxu0 %v247
        %v509 = vpop.f32.mrf.mxu0
        %v510 = vadd.f32 %v283, %v509
        %v511 = vpop.f32.mrf.mxu0
        %v512 = vadd.f32 %v283, %v511
        %513 = vdwg.mxu0
        %514 = vmatpush.bf16.msra.mxu0 %v391
        %515 = vmatpush.bf16.msra.mxu0 %v388
        %516 = vmatpush.bf16.msra.mxu0 %v385
        %517 = vmatpush.bf16.msra.mxu0 %v382
        %518 = vmatpush.bf16.msra.mxu0 %v379
        %519 = vmatpush.bf16.msra.mxu0 %v376
        %520 = vmatpush.bf16.msra.mxu0 %v373
        %521 = vmatpush.bf16.msra.mxu0 %v370
        %522 = vmatmul.bf16.gmra.mxu0 %v240
        %v523 = vpop.f32.mrf.mxu0
        %v524 = vadd.f32 %v284, %v523
        %v525 = vpop.f32.mrf.mxu0
        %v526 = vadd.f32 %v284, %v525
        %527 = vmatmul.bf16.gmra.mxu0 %v241
        %v528 = vpop.f32.mrf.mxu0
        %v529 = vadd.f32 %v284, %v528
        %v530 = vpop.f32.mrf.mxu0
        %v531 = vadd.f32 %v284, %v530
        %532 = vmatmul.bf16.gmra.mxu0 %v242
        %v533 = vpop.f32.mrf.mxu0
        %v534 = vadd.f32 %v284, %v533
        %v535 = vpop.f32.mrf.mxu0
        %v536 = vadd.f32 %v284, %v535
        %537 = vmatmul.bf16.gmra.mxu0 %v243
        %v538 = vpop.f32.mrf.mxu0
        %v539 = vadd.f32 %v284, %v538
        %v540 = vpop.f32.mrf.mxu0
        %v541 = vadd.f32 %v284, %v540
        %542 = vmatmul.bf16.gmra.mxu0 %v244
        %v543 = vpop.f32.mrf.mxu0
        %v544 = vadd.f32 %v284, %v543
        %v545 = vpop.f32.mrf.mxu0
        %v546 = vadd.f32 %v284, %v545
        %547 = vmatmul.bf16.gmra.mxu0 %v245
        %v548 = vpop.f32.mrf.mxu0
        %v549 = vadd.f32 %v284, %v548
        %v550 = vpop.f32.mrf.mxu0
        %v551 = vadd.f32 %v284, %v550
        %552 = vmatmul.bf16.gmra.mxu0 %v246
        %v553 = vpop.f32.mrf.mxu0
        %v554 = vadd.f32 %v284, %v553
        %v555 = vpop.f32.mrf.mxu0
        %v556 = vadd.f32 %v284, %v555
        %557 = vmatmul.bf16.gmra.mxu0 %v247
        %v558 = vpop.f32.mrf.mxu0
        %v559 = vadd.f32 %v284, %v558
        %v560 = vpop.f32.mrf.mxu0
        %v561 = vadd.f32 %v284, %v560
        %562 = vdwg.mxu0
        %563 = vst [vmem:[%s221] sm:$0xff] %v426
        %564 = vst [vmem:[%s221 + $0x8] sm:$0xff] %v475
        %565 = vst [vmem:[%s221 + $0x10] sm:$0xff] %v524
        %566 = vst [vmem:[%s221 + $0x18] sm:$0xff] %v428
        %567 = vst [vmem:[%s221 + $0x20] sm:$0xff] %v477
        %568 = vst [vmem:[%s221 + $0x28] sm:$0xff] %v526
        %569 = vst [vmem:[%s221 + $0x30] sm:$0xff] %v431
        %570 = vst [vmem:[%s221 + $0x38] sm:$0xff] %v480
        %571 = vst [vmem:[%s221 + $0x40] sm:$0xff] %v529
        %572 = vst [vmem:[%s221 + $0x48] sm:$0xff] %v433
        %573 = vst [vmem:[%s221 + $0x50] sm:$0xff] %v482
        %574 = vst [vmem:[%s221 + $0x58] sm:$0xff] %v531
        %575 = vst [vmem:[%s221 + $0x60] sm:$0xff] %v436
        %576 = vst [vmem:[%s221 + $0x68] sm:$0xff] %v485
        %577 = vst [vmem:[%s221 + $0x70] sm:$0xff] %v534
        %578 = vst [vmem:[%s221 + $0x78] sm:$0xff] %v438
        %579 = vst [vmem:[%s221 + $0x80] sm:$0xff] %v487
        %580 = vst [vmem:[%s221 + $0x88] sm:$0xff] %v536
        %581 = vst [vmem:[%s221 + $0x90] sm:$0xff] %v441
        %582 = vst [vmem:[%s221 + $0x98] sm:$0xff] %v490
        %583 = vst [vmem:[%s221 + $0xa0] sm:$0xff] %v539
        %584 = vst [vmem:[%s221 + $0xa8] sm:$0xff] %v443
        %585 = vst [vmem:[%s221 + $0xb0] sm:$0xff] %v492
        %586 = vst [vmem:[%s221 + $0xb8] sm:$0xff] %v541
        %587 = vst [vmem:[%s221 + $0xc0] sm:$0xff] %v446
        %588 = vst [vmem:[%s221 + $0xc8] sm:$0xff] %v495
        %589 = vst [vmem:[%s221 + $0xd0] sm:$0xff] %v544
        %590 = vst [vmem:[%s221 + $0xd8] sm:$0xff] %v448
        %591 = vst [vmem:[%s221 + $0xe0] sm:$0xff] %v497
        %592 = vst [vmem:[%s221 + $0xe8] sm:$0xff] %v546
        %593 = vst [vmem:[%s221 + $0xf0] sm:$0xff] %v451
        %594 = vst [vmem:[%s221 + $0xf8] sm:$0xff] %v500
        %595 = vst [vmem:[%s221 + $0x100] sm:$0xff] %v549
        %596 = vst [vmem:[%s221 + $0x108] sm:$0xff] %v453
        %597 = vst [vmem:[%s221 + $0x110] sm:$0xff] %v502
        %598 = vst [vmem:[%s221 + $0x118] sm:$0xff] %v551
        %599 = vst [vmem:[%s221 + $0x120] sm:$0xff] %v456
        %600 = vst [vmem:[%s221 + $0x128] sm:$0xff] %v505
        %601 = vst [vmem:[%s221 + $0x130] sm:$0xff] %v554
        %602 = vst [vmem:[%s221 + $0x138] sm:$0xff] %v458
        %603 = vst [vmem:[%s221 + $0x140] sm:$0xff] %v507
        %604 = vst [vmem:[%s221 + $0x148] sm:$0xff] %v556
        %605 = vst [vmem:[%s221 + $0x150] sm:$0xff] %v461
        %606 = vst [vmem:[%s221 + $0x158] sm:$0xff] %v510
        %607 = vst [vmem:[%s221 + $0x160] sm:$0xff] %v559
        %608 = vst [vmem:[%s221 + $0x168] sm:$0xff] %v463
        %609 = vst [vmem:[%s221 + $0x170] sm:$0xff] %v512
        %610 = vst [vmem:[%s221 + $0x178] sm:$0xff] %v561
        %s611 = sand.u32 %s97, 1
        %s612 = scalar_lea.sflag [#allocation4], %s611
        %s613 = sand.u32 %s97, 1
        %s614 = smul.addr %s613, 384
        %s615 = scalar_lea.vmem [#allocation8], %s614
        // Predicated region
        $region45: #{tpu_custom_call.1} parent=31 // pred_check
          %p616 = pneg %p107
        $region46: #{tpu_custom_call.1} parent=31 // pred_check_branch
          %618 = sbr.rel (%p616) target = $region48
        $region47: #{tpu_custom_call.1} parent=31 // pred_region
          %s619 = smul.u32 16, %s21
          %621 = vsyncadd %s612, 0
          %s622 = smul.addr %s619, 3
          %s623 = smul.addr %s622, 8
          %s624 = scalar_lea.hbm %s3, %s623
          %s625 = sshll.u32 %s615, 4
          %s626 = int_to_ptr.vmem [resolvable:$true] %s625
          %s627 = sshll.u32 %s624, 4
          %s628 = int_to_ptr.hbm [resolvable:$true] %s627
          %633 = dma.vmem_to_hbm [thread:$0]  %s626, 6144, %s628, %s612, 384, 384, 24
        $region48: #{tpu_custom_call.1} parent=31 // pred_fallthru
          _
      $region32: #{tpu_custom_call.1} parent=5 // pred_fallthru
        _
      %p634 = scmp.le.s32.totalorder 2, %s16
      // Predicated region
      $region49: #{tpu_custom_call.1} parent=5 // pred_check
        %p635 = pneg %p634
      $region50: #{tpu_custom_call.1} parent=5 // pred_check_branch
        %637 = sbr.rel (%p635) target = $region52
      $region51: #{tpu_custom_call.1} parent=5 // pred_region
        %s638 = ssub.s32 %s16, 2
        // Predicated region
        $region53: #{tpu_custom_call.1} parent=51 // pred_check
          %p639 = pneg %p113
        $region54: #{tpu_custom_call.1} parent=51 // pred_check_branch
          %641 = sbr.rel (%p639) target = $region56
        $region55: #{tpu_custom_call.1} parent=51 // pred_region
          %s642 = sand.u32 %s98, 1
          %s643 = scalar_lea.sflag [#allocation4], %s642
          %s644 = sand.u32 %s98, 1
          %s645 = smul.addr %s644, 384
          %s646 = scalar_lea.vmem [#allocation8], %s645
          %648 = dma.done %s643, 6144
        $region56: #{tpu_custom_call.1} parent=51 // pred_fallthru
          _
      $region52: #{tpu_custom_call.1} parent=5 // pred_fallthru
        _
    $region6: #{tpu_custom_call.1} parent=1 // loop_footer
      %s20 = sadd.s32 1, %s16
    $region7: #{tpu_custom_call.1} parent=1 // loop_footer_branch
      %15 = sbr.rel target = $region3
    $region8: #{tpu_custom_call.1} parent=1 // loop_exit
      _
    %649 = vsyncpa [#allocation3], 1
    %s650 = scalar_lea.sflag [#allocation3], 1
    %651 = vsyncpa %s650, 1
    %652 = vsyncpa [#allocation6], 1
    %653 = vsyncpa [#allocation4], 1
    %s654 = scalar_lea.sflag [#allocation4], 1
    %655 = vsyncpa %s654, 1

</llo_original>
